<compile_context>
chip_gen: v7x
topology: tpu7x:2x2x1
jax: 0.10.0
libtpu: 0.0.40
codegen_flags: <defaults>
</compile_context>

<pallas_src>
import jax
import jax.numpy as jnp
import numpy as np
from jax.experimental import pallas as pl
from jax.experimental.pallas import tpu as pltpu


def _round_up(x, m):
    return ((x + m - 1) // m) * m


def _make_block_kernel(*, L, L_pad, has_start, compute_dtype):
    """Kernel body for one (M_t, C) row-tile holding whole batch elements."""

    def kernel(*refs):
        if has_start:
            (x_ref, ws_ref, bs_ref, wf1_ref, b1_ref, wf2_ref, b2_ref, o_ref) = refs
        else:
            (x_ref, wf1_ref, b1_ref, wf2_ref, b2_ref, o_ref) = refs

        M_t, C = o_ref.shape            # C == CO_pad (multiple of 128)

        # Rows are (batch_element, position) flattened with element stride
        # L_pad; real length is L. Mask the single row of each shifted copy
        # that would otherwise come from the neighbouring element / rotation
        # wrap -> exact Conv1d 'same' zero padding per element.
        # Broadcast ONCE per grid step (JAX doesn't CSE broadcast_in_dim) and
        # reuse in both convs.
        pos = jax.lax.broadcasted_iota(jnp.int32, (M_t, 1), 0) % L_pad
        prev_keep = jnp.broadcast_to(pos != 0, (M_t, C))        # x[l-1] pad at l==0
        next_keep = jnp.broadcast_to(pos != (L - 1), (M_t, C))  # x[l+1] pad at l==L-1

        def conv3(inp_f32, w_ref, b_ref):
            # k=3 'same' conv as three accumulated channel matmuls fed straight
            # from vregs (no im2col VMEM round-trip). Shifted copies via XLU
            # rolls (non-negative shifts; M_t-1 == roll by -1).
            x_prev = jnp.where(prev_keep,
                               pltpu.roll(inp_f32, shift=1, axis=0),
                               0.0).astype(compute_dtype)
            x_next = jnp.where(next_keep,
                               pltpu.roll(inp_f32, shift=M_t - 1, axis=0),
                               0.0).astype(compute_dtype)
            x_c = inp_f32.astype(compute_dtype)
            y = jnp.dot(x_prev, w_ref[0:C, :], preferred_element_type=jnp.float32)
            y = y + jnp.dot(x_c, w_ref[C:2 * C, :], preferred_element_type=jnp.float32)
            y = y + jnp.dot(x_next, w_ref[2 * C:3 * C, :], preferred_element_type=jnp.float32)
            return y + b_ref[...]

        if has_start:
            # 1x1 "start" conv == channel matmul (f32 accumulation).
            h = (jnp.dot(x_ref[...], ws_ref[...], preferred_element_type=jnp.float32)
                 + bs_ref[...])
            # Park the residual in the VMEM-resident output block (no scratch).
            o_ref[...] = h
        else:
            h = x_ref[...].astype(jnp.float32)

        h1 = jnp.maximum(conv3(h, wf1_ref, b1_ref), 0.0)
        # dropout -> identity (eval mode)
        h2 = jnp.maximum(conv3(h1, wf2_ref, b2_ref), 0.0)
        # dropout -> identity (eval mode)

        if has_start:
            o_ref[...] = (h2 + o_ref[...]).astype(o_ref.dtype)
        else:
            # Residual IS the input block: re-read it instead of keeping a
            # long-lived copy across both convs.
            o_ref[...] = (h2 + x_ref[...].astype(jnp.float32)).astype(o_ref.dtype)

    return kernel


def block_forward(x_ncl, params, *, compute_dtype=jnp.bfloat16, target_rows=4096):
    """x_ncl: (N, C_in, L) float32, matching PyTorch Conv1d input layout.

    compute_dtype: dtype of activations/weights fed to the MXU and shipped
    through HBM (bf16 recommended on v5e/v6e/v7x; accumulation is always f32).
    """
    ws, bs, w1, b1, w2, b2 = params      # PyTorch-shaped weights
    N, C_in, L = x_ncl.shape
    C_out = w1.shape[0]
    has_start = ws is not None
    if not has_start:
        assert C_in == C_out, "skip_start=False requires C_in == C_out"

    LANE = 128
    CI_pad = _round_up(C_in, LANE)       # lane-dense channel axes
    CO_pad = _round_up(C_out, LANE)
    L_pad = _round_up(L, 16)             # sublane-aligned (f32 and bf16 blocks)

    # Row-tile sizing: whole batch elements only (conv halos never cross a
    # tile). Cap so double-buffered in+out blocks stay v7x-VMEM-safe, and keep
    # the grid >= 2 tiles when N >= 2 so both v7x TensorCores get work.
    cd_bytes = jnp.dtype(compute_dtype).itemsize
    per_row_bytes = 2 * (CI_pad * cd_bytes + CO_pad * 4)      # 2x-buffered in+out
    row_budget = max(L_pad, (24 * 1024 * 1024) // per_row_bytes)
    rows_cap = max(L_pad, min(target_rows, row_budget))
    NB = max(1, min(N, rows_cap // L_pad))
    if N >= 2:
        NB = min(NB, -(-N // 2))          # ceil(N/2) -> at least 2 grid tiles
    M_t = NB * L_pad
    n_tiles = -(-N // NB)                 # ceil; N need not divide evenly
    N_pad = n_tiles * NB

    # NCL -> NLC (channels on lanes), zero-pad channels/length/batch, fold
    # (N_pad, L_pad) into the matmul M axis, ship activations in compute_dtype.
    x_nlc = jnp.transpose(x_ncl, (0, 2, 1)).astype(jnp.float32)
    x_pad = jnp.pad(x_nlc, ((0, N_pad - N), (0, L_pad - L), (0, CI_pad - C_in)))
    x2d = x_pad.reshape(N_pad * L_pad, CI_pad).astype(compute_dtype)

    def pad2(a, rows, cols):
        return jnp.pad(a, ((0, rows - a.shape[0]), (0, cols - a.shape[1])))

    def fuse_conv3(w):
        # PyTorch (C_out, C_in_eff, 3) -> stacked taps (3*CO_pad, CO_pad);
        # tap t multiplies x[l - 1 + t] (cross-correlation, 'same' padding).
        taps = [pad2(jnp.transpose(w[:, :, t]), CO_pad, CO_pad) for t in range(3)]
        return jnp.concatenate(taps, axis=0).astype(compute_dtype)

    wf1 = fuse_conv3(w1)
    wf2 = fuse_conv3(w2)
    b1r = pad2(b1.reshape(1, C_out), 1, CO_pad).astype(jnp.float32)
    b2r = pad2(b2.reshape(1, C_out), 1, CO_pad).astype(jnp.float32)

    operands = [x2d]
    in_specs = [pl.BlockSpec((M_t, CI_pad), lambda i: (i, 0))]
    if has_start:
        ws2 = pad2(jnp.transpose(ws[:, :, 0]), CI_pad, CO_pad).astype(compute_dtype)
        bs2 = pad2(bs.reshape(1, C_out), 1, CO_pad).astype(jnp.float32)
        operands += [ws2, bs2]
        in_specs += [pl.BlockSpec((CI_pad, CO_pad), lambda i: (0, 0)),
                     pl.BlockSpec((1, CO_pad), lambda i: (0, 0))]
    operands += [wf1, b1r, wf2, b2r]
    in_specs += [pl.BlockSpec((3 * CO_pad, CO_pad), lambda i: (0, 0)),
                 pl.BlockSpec((1, CO_pad), lambda i: (0, 0)),
                 pl.BlockSpec((3 * CO_pad, CO_pad), lambda i: (0, 0)),
                 pl.BlockSpec((1, CO_pad), lambda i: (0, 0))]

    # Explicit scoped-VMEM limit: generous but below v7x's 64 MiB physical.
    est_vmem = (2 * M_t * CI_pad * cd_bytes
                + 2 * M_t * CO_pad * 4
                + 2 * (CI_pad * CO_pad + 2 * 3 * CO_pad * CO_pad) * cd_bytes
                + 8 * CO_pad * 4)
    vmem_limit = int(min(max(2 * est_vmem, 32 * 1024 * 1024), 56 * 1024 * 1024))

    kernel = _make_block_kernel(L=L, L_pad=L_pad, has_start=has_start,
                                compute_dtype=compute_dtype)

    out2d = pl.pallas_call(
        kernel,
        out_shape=jax.ShapeDtypeStruct((N_pad * L_pad, CO_pad), jnp.float32),
        grid_spec=pltpu.PrefetchScalarGridSpec(
            num_scalar_prefetch=0,
            grid=(n_tiles,),
            in_specs=in_specs,
            out_specs=pl.BlockSpec((M_t, CO_pad), lambda i: (i, 0)),
        ),
        compiler_params=pltpu.CompilerParams(
            dimension_semantics=("parallel",),
            vmem_limit_bytes=vmem_limit),
    )(*operands)

    out = out2d.reshape(N_pad, L_pad, CO_pad)[:N, :L, :C_out]
    return jnp.transpose(out, (0, 2, 1))                     # back to (N, C_out, L)


def init_params(key, start_layer, end_layer, kernal=3):
    """Deterministic Conv1d-style init (uniform(-1/sqrt(fan_in*k), ...))."""
    ks = jax.random.split(key, 6)

    def conv_init(kw, kb, c_out, c_in, k):
        bound = 1.0 / np.sqrt(c_in * k)
        w = jax.random.uniform(kw, (c_out, c_in, k), jnp.float32, -bound, bound)
        b = jax.random.uniform(kb, (c_out,), jnp.float32, -bound, bound)
        return w, b

    skip_start = start_layer != end_layer
    if skip_start:
        ws, bs = conv_init(ks[0], ks[1], end_layer, start_layer, 1)
    else:
        ws, bs = None, None
    w1, b1 = conv_init(ks[2], ks[3], end_layer, end_layer, kernal)
    w2, b2 = conv_init(ks[4], ks[5], end_layer, end_layer, kernal)
    return (ws, bs, w1, b1, w2, b2)


def _ref_forward(x_ncl, params):
    """Pure-JAX reference (NCL, mirrors the PyTorch forward)."""
    ws, bs, w1, b1, w2, b2 = params
    dn = jax.lax.conv_dimension_numbers(x_ncl.shape, (1, 1, 1), ("NCH", "OIH", "NCH"))

    def conv1d(x, w, b, pad):
        y = jax.lax.conv_general_dilated(x, w, (1,), [(pad, pad)], dimension_numbers=dn)
        return y + b[None, :, None]

    x = x_ncl
    if ws is not None:
        x = conv1d(x, ws, bs, 0)
    temp = x
    x = jnp.maximum(conv1d(x, w1, b1, 1), 0.0)
    x = jnp.maximum(conv1d(x, w2, b2, 1), 0.0)
    return x + temp


if __name__ == "__main__":
    key = jax.random.PRNGKey(0)

    # Case 1: start_layer != end_layer (skip_start == True path), f32 compute,
    # tight tolerance.
    N, C_IN, C_OUT, L = 2, 4, 8, 16
    k_x, k_p, k_x2, k_p2 = jax.random.split(key, 4)
    x = jax.random.normal(k_x, (N, C_IN, L), jnp.float32)
    params = init_params(k_p, C_IN, C_OUT, kernal=3)

    out = jax.block_until_ready(block_forward(x, params, compute_dtype=jnp.float32))
    ref = _ref_forward(x, params)
    np.testing.assert_allclose(np.asarray(out), np.asarray(ref), rtol=1e-5, atol=1e-5)

    # Case 2: start_layer == end_layer (no 1x1 conv operands at all), f32,
    # odd batch size to exercise batch-row padding (NB does not divide N).
    N2 = 3
    x2 = jax.random.normal(k_x2, (N2, C_OUT, L), jnp.float32)
    params2 = init_params(k_p2, C_OUT, C_OUT, kernal=3)
    out2 = jax.block_until_ready(block_forward(x2, params2, compute_dtype=jnp.float32))
    ref2 = _ref_forward(x2, params2)
    np.testing.assert_allclose(np.asarray(out2), np.asarray(ref2), rtol=1e-5, atol=1e-5)

    # Case 3: default bf16 path (bf16 activations + weights through HBM/MXU,
    # f32 accumulation); looser tolerance because inputs are bf16-rounded.
    out_bf16 = jax.block_until_ready(block_forward(x, params))
    np.testing.assert_allclose(np.asarray(out_bf16), np.asarray(ref),
                               rtol=5e-2, atol=5e-2)

    print("KERNEL_OK")
</pallas_src>

<mosaic_0001>
module attributes {stable_mosaic.version = 11 : i64} {
  func.func @kernel(%arg0: i32, %arg1: memref<16x128xf32, #tpu.memory_space<vmem>>, %arg2: memref<128x128xf32, #tpu.memory_space<vmem>>, %arg3: memref<1x128xf32, #tpu.memory_space<vmem>>, %arg4: memref<384x128xf32, #tpu.memory_space<vmem>>, %arg5: memref<1x128xf32, #tpu.memory_space<vmem>>, %arg6: memref<384x128xf32, #tpu.memory_space<vmem>>, %arg7: memref<1x128xf32, #tpu.memory_space<vmem>>, %arg8: memref<16x128xf32, #tpu.memory_space<vmem>>) attributes {dimension_semantics = [#tpu.dimension_semantics<parallel>], iteration_bounds = array<i64: 2>, scalar_prefetch = 0 : i64, scratch_operands = 0 : i64, tpu.core_type = #tpu.core_type<tc>, window_params = [{transform_indices = @transform_0, window_bounds = array<i64: 16, 128>}, {pipeline_mode = #tpu.pipeline_mode<synchronous>, transform_indices = @transform_1, window_bounds = array<i64: 128, 128>}, {pipeline_mode = #tpu.pipeline_mode<synchronous>, transform_indices = @transform_2, window_bounds = array<i64: 1, 128>}, {pipeline_mode = #tpu.pipeline_mode<synchronous>, transform_indices = @transform_3, window_bounds = array<i64: 384, 128>}, {pipeline_mode = #tpu.pipeline_mode<synchronous>, transform_indices = @transform_4, window_bounds = array<i64: 1, 128>}, {pipeline_mode = #tpu.pipeline_mode<synchronous>, transform_indices = @transform_5, window_bounds = array<i64: 384, 128>}, {pipeline_mode = #tpu.pipeline_mode<synchronous>, transform_indices = @transform_6, window_bounds = array<i64: 1, 128>}, {transform_indices = @transform_7, window_bounds = array<i64: 16, 128>}]} {
    %0 = tpu.iota {dimensions = array<i32: 0>} : vector<16x1xi32>
    %c16_i32 = arith.constant 16 : i32
    %c0_i32 = arith.constant 0 : i32
    %1 = arith.cmpi eq, %c16_i32, %c0_i32 : i32
    %c1_i32 = arith.constant 1 : i32
    %2 = arith.select %1, %c1_i32, %c16_i32 : i32
    %3 = vector.broadcast %2 : i32 to vector<16x1xi32>
    %4 = arith.remsi %0, %3 : vector<16x1xi32>
    %c0_i32_0 = arith.constant 0 : i32
    %5 = vector.broadcast %c0_i32_0 : i32 to vector<16x1xi32>
    %6 = arith.cmpi ne, %4, %5 : vector<16x1xi32>
    %c0_i32_1 = arith.constant 0 : i32
    %7 = vector.broadcast %c0_i32_1 : i32 to vector<16x1xi32>
    %8 = arith.cmpi slt, %4, %7 : vector<16x1xi32>
    %c0_i32_2 = arith.constant 0 : i32
    %9 = arith.cmpi slt, %2, %c0_i32_2 : i32
    %10 = vector.broadcast %9 : i1 to vector<16x1xi1>
    %11 = vector.broadcast %10 : vector<16x1xi1> to vector<16x1xi1>
    %12 = arith.xori %8, %11 : vector<16x1xi1>
    %13 = arith.andi %12, %6 : vector<16x1xi1>
    %14 = vector.broadcast %2 : i32 to vector<16x1xi32>
    %15 = arith.addi %4, %14 : vector<16x1xi32>
    %16 = arith.select %13, %15, %4 : vector<16x1xi1>, vector<16x1xi32>
    %c0_i32_3 = arith.constant 0 : i32
    %17 = vector.broadcast %c0_i32_3 : i32 to vector<16x1xi32>
    %18 = arith.cmpi ne, %16, %17 : vector<16x1xi32>
    %19 = vector.shape_cast %18 : vector<16x1xi1> to vector<16x1xi1>
    %20 = vector.broadcast %19 : vector<16x1xi1> to vector<16x128xi1>
    %c15_i32 = arith.constant 15 : i32
    %21 = vector.broadcast %c15_i32 : i32 to vector<16x1xi32>
    %22 = arith.cmpi ne, %16, %21 : vector<16x1xi32>
    %23 = vector.shape_cast %22 : vector<16x1xi1> to vector<16x1xi1>
    %24 = vector.broadcast %23 : vector<16x1xi1> to vector<16x128xi1>
    %c0 = arith.constant 0 : index
    %c0_4 = arith.constant 0 : index
    %25 = vector.load %arg1[%c0, %c0_4] : memref<16x128xf32, #tpu.memory_space<vmem>>, vector<16x128xf32>
    %c0_5 = arith.constant 0 : index
    %c0_6 = arith.constant 0 : index
    %26 = vector.load %arg2[%c0_5, %c0_6] : memref<128x128xf32, #tpu.memory_space<vmem>>, vector<128x128xf32>
    %cst = arith.constant dense<0.000000e+00> : vector<16x128xf32>
    %27 = tpu.matmul %25, %26, %cst {dimension_numbers = #tpu.dot_dimension_numbers<[1], [0], [0], [1], [0, 0, 1, 1], [], []>} : vector<16x128xf32>, vector<128x128xf32>, vector<16x128xf32> -> vector<16x128xf32>
    %c0_7 = arith.constant 0 : index
    %c0_8 = arith.constant 0 : index
    %28 = vector.load %arg3[%c0_7, %c0_8] : memref<1x128xf32, #tpu.memory_space<vmem>>, vector<1x128xf32>
    %29 = vector.broadcast %28 : vector<1x128xf32> to vector<16x128xf32>
    %30 = arith.addf %27, %29 : vector<16x128xf32>
    %c0_9 = arith.constant 0 : index
    %c0_10 = arith.constant 0 : index
    %31 = vector.load %arg8[%c0_9, %c0_10] : memref<16x128xf32, #tpu.memory_space<vmem>>, vector<16x128xf32>
    tpu.vector_store %arg8[%c0_9, %c0_10], %30 {strides = array<i32>} : memref<16x128xf32, #tpu.memory_space<vmem>>, vector<16x128xf32>,
    %c1_i32_11 = arith.constant 1 : i32
    %32 = tpu.dynamic_rotate %30 by %c1_i32_11 dim 0 : vector<16x128xf32>, i32 -> vector<16x128xf32>
    %cst_12 = arith.constant 0.000000e+00 : f32
    %33 = vector.broadcast %cst_12 : f32 to vector<16x128xf32>
    %34 = arith.select %20, %32, %33 : vector<16x128xi1>, vector<16x128xf32>
    %c15_i32_13 = arith.constant 15 : i32
    %35 = tpu.dynamic_rotate %30 by %c15_i32_13 dim 0 : vector<16x128xf32>, i32 -> vector<16x128xf32>
    %cst_14 = arith.constant 0.000000e+00 : f32
    %36 = vector.broadcast %cst_14 : f32 to vector<16x128xf32>
    %37 = arith.select %24, %35, %36 : vector<16x128xi1>, vector<16x128xf32>
    %c0_15 = arith.constant 0 : index
    %c0_16 = arith.constant 0 : index
    %38 = vector.load %arg4[%c0_15, %c0_16] : memref<384x128xf32, #tpu.memory_space<vmem>>, vector<128x128xf32>
    %cst_17 = arith.constant dense<0.000000e+00> : vector<16x128xf32>
    %39 = tpu.matmul %34, %38, %cst_17 {dimension_numbers = #tpu.dot_dimension_numbers<[1], [0], [0], [1], [0, 0, 1, 1], [], []>} : vector<16x128xf32>, vector<128x128xf32>, vector<16x128xf32> -> vector<16x128xf32>
    %c128 = arith.constant 128 : index
    %c0_18 = arith.constant 0 : index
    %40 = vector.load %arg4[%c128, %c0_18] : memref<384x128xf32, #tpu.memory_space<vmem>>, vector<128x128xf32>
    %cst_19 = arith.constant dense<0.000000e+00> : vector<16x128xf32>
    %41 = tpu.matmul %30, %40, %cst_19 {dimension_numbers = #tpu.dot_dimension_numbers<[1], [0], [0], [1], [0, 0, 1, 1], [], []>} : vector<16x128xf32>, vector<128x128xf32>, vector<16x128xf32> -> vector<16x128xf32>
    %42 = arith.addf %39, %41 : vector<16x128xf32>
    %c256 = arith.constant 256 : index
    %c0_20 = arith.constant 0 : index
    %43 = vector.load %arg4[%c256, %c0_20] : memref<384x128xf32, #tpu.memory_space<vmem>>, vector<128x128xf32>
    %cst_21 = arith.constant dense<0.000000e+00> : vector<16x128xf32>
    %44 = tpu.matmul %37, %43, %cst_21 {dimension_numbers = #tpu.dot_dimension_numbers<[1], [0], [0], [1], [0, 0, 1, 1], [], []>} : vector<16x128xf32>, vector<128x128xf32>, vector<16x128xf32> -> vector<16x128xf32>
    %45 = arith.addf %42, %44 : vector<16x128xf32>
    %c0_22 = arith.constant 0 : index
    %c0_23 = arith.constant 0 : index
    %46 = vector.load %arg5[%c0_22, %c0_23] : memref<1x128xf32, #tpu.memory_space<vmem>>, vector<1x128xf32>
    %47 = vector.broadcast %46 : vector<1x128xf32> to vector<16x128xf32>
    %48 = arith.addf %45, %47 : vector<16x128xf32>
    %cst_24 = arith.constant 0.000000e+00 : f32
    %49 = vector.broadcast %cst_24 : f32 to vector<16x128xf32>
    %50 = arith.maximumf %48, %49 : vector<16x128xf32>
    %c1_i32_25 = arith.constant 1 : i32
    %51 = tpu.dynamic_rotate %50 by %c1_i32_25 dim 0 : vector<16x128xf32>, i32 -> vector<16x128xf32>
    %cst_26 = arith.constant 0.000000e+00 : f32
    %52 = vector.broadcast %cst_26 : f32 to vector<16x128xf32>
    %53 = arith.select %20, %51, %52 : vector<16x128xi1>, vector<16x128xf32>
    %c15_i32_27 = arith.constant 15 : i32
    %54 = tpu.dynamic_rotate %50 by %c15_i32_27 dim 0 : vector<16x128xf32>, i32 -> vector<16x128xf32>
    %cst_28 = arith.constant 0.000000e+00 : f32
    %55 = vector.broadcast %cst_28 : f32 to vector<16x128xf32>
    %56 = arith.select %24, %54, %55 : vector<16x128xi1>, vector<16x128xf32>
    %c0_29 = arith.constant 0 : index
    %c0_30 = arith.constant 0 : index
    %57 = vector.load %arg6[%c0_29, %c0_30] : memref<384x128xf32, #tpu.memory_space<vmem>>, vector<128x128xf32>
    %cst_31 = arith.constant dense<0.000000e+00> : vector<16x128xf32>
    %58 = tpu.matmul %53, %57, %cst_31 {dimension_numbers = #tpu.dot_dimension_numbers<[1], [0], [0], [1], [0, 0, 1, 1], [], []>} : vector<16x128xf32>, vector<128x128xf32>, vector<16x128xf32> -> vector<16x128xf32>
    %c128_32 = arith.constant 128 : index
    %c0_33 = arith.constant 0 : index
    %59 = vector.load %arg6[%c128_32, %c0_33] : memref<384x128xf32, #tpu.memory_space<vmem>>, vector<128x128xf32>
    %cst_34 = arith.constant dense<0.000000e+00> : vector<16x128xf32>
    %60 = tpu.matmul %50, %59, %cst_34 {dimension_numbers = #tpu.dot_dimension_numbers<[1], [0], [0], [1], [0, 0, 1, 1], [], []>} : vector<16x128xf32>, vector<128x128xf32>, vector<16x128xf32> -> vector<16x128xf32>
    %61 = arith.addf %58, %60 : vector<16x128xf32>
    %c256_35 = arith.constant 256 : index
    %c0_36 = arith.constant 0 : index
    %62 = vector.load %arg6[%c256_35, %c0_36] : memref<384x128xf32, #tpu.memory_space<vmem>>, vector<128x128xf32>
    %cst_37 = arith.constant dense<0.000000e+00> : vector<16x128xf32>
    %63 = tpu.matmul %56, %62, %cst_37 {dimension_numbers = #tpu.dot_dimension_numbers<[1], [0], [0], [1], [0, 0, 1, 1], [], []>} : vector<16x128xf32>, vector<128x128xf32>, vector<16x128xf32> -> vector<16x128xf32>
    %64 = arith.addf %61, %63 : vector<16x128xf32>
    %c0_38 = arith.constant 0 : index
    %c0_39 = arith.constant 0 : index
    %65 = vector.load %arg7[%c0_38, %c0_39] : memref<1x128xf32, #tpu.memory_space<vmem>>, vector<1x128xf32>
    %66 = vector.broadcast %65 : vector<1x128xf32> to vector<16x128xf32>
    %67 = arith.addf %64, %66 : vector<16x128xf32>
    %cst_40 = arith.constant 0.000000e+00 : f32
    %68 = vector.broadcast %cst_40 : f32 to vector<16x128xf32>
    %69 = arith.maximumf %67, %68 : vector<16x128xf32>
    %c0_41 = arith.constant 0 : index
    %c0_42 = arith.constant 0 : index
    %70 = vector.load %arg8[%c0_41, %c0_42] : memref<16x128xf32, #tpu.memory_space<vmem>>, vector<16x128xf32>
    %71 = arith.addf %69, %70 : vector<16x128xf32>
    %c0_43 = arith.constant 0 : index
    %c0_44 = arith.constant 0 : index
    %72 = vector.load %arg8[%c0_43, %c0_44] : memref<16x128xf32, #tpu.memory_space<vmem>>, vector<16x128xf32>
    tpu.vector_store %arg8[%c0_43, %c0_44], %71 {strides = array<i32>} : memref<16x128xf32, #tpu.memory_space<vmem>>, vector<16x128xf32>,
    return
  }
  func.func @transform_0(%arg0: i32) -> (i32, i32) {
    %c0_i32 = arith.constant 0 : i32
    %c0_i32_0 = arith.constant 0 : i32
    return %arg0, %c0_i32 : i32, i32
  }
  func.func @transform_1(%arg0: i32) -> (i32, i32) {
    %c0_i32 = arith.constant 0 : i32
    %c0_i32_0 = arith.constant 0 : i32
    %c0_i32_1 = arith.constant 0 : i32
    return %c0_i32, %c0_i32_0 : i32, i32
  }
  func.func @transform_2(%arg0: i32) -> (i32, i32) {
    %c0_i32 = arith.constant 0 : i32
    %c0_i32_0 = arith.constant 0 : i32
    %c0_i32_1 = arith.constant 0 : i32
    return %c0_i32, %c0_i32_0 : i32, i32
  }
  func.func @transform_3(%arg0: i32) -> (i32, i32) {
    %c0_i32 = arith.constant 0 : i32
    %c0_i32_0 = arith.constant 0 : i32
    %c0_i32_1 = arith.constant 0 : i32
    return %c0_i32, %c0_i32_0 : i32, i32
  }
  func.func @transform_4(%arg0: i32) -> (i32, i32) {
    %c0_i32 = arith.constant 0 : i32
    %c0_i32_0 = arith.constant 0 : i32
    %c0_i32_1 = arith.constant 0 : i32
    return %c0_i32, %c0_i32_0 : i32, i32
  }
  func.func @transform_5(%arg0: i32) -> (i32, i32) {
    %c0_i32 = arith.constant 0 : i32
    %c0_i32_0 = arith.constant 0 : i32
    %c0_i32_1 = arith.constant 0 : i32
    return %c0_i32, %c0_i32_0 : i32, i32
  }
  func.func @transform_6(%arg0: i32) -> (i32, i32) {
    %c0_i32 = arith.constant 0 : i32
    %c0_i32_0 = arith.constant 0 : i32
    %c0_i32_1 = arith.constant 0 : i32
    return %c0_i32, %c0_i32_0 : i32, i32
  }
  func.func @transform_7(%arg0: i32) -> (i32, i32) {
    %c0_i32 = arith.constant 0 : i32
    %c0_i32_0 = arith.constant 0 : i32
    return %arg0, %c0_i32 : i32, i32
  }
}

</mosaic_0001>

<llo_original>
// kernel: tpu_custom_call.1
$region0: #{tpu_custom_call.1}
  #allocation0 [shape = 'u32[]', space=smem, size = 0x4, offset = 0x4, fixed_abs, tag = 'smem constant byte address 0x4 - core index']
  #allocation1 [shape = 'u32[144,128]{1,0:T(1,128)}', space=vmem, size = 0x12000, scoped, tag = 'internal scratch']
  %s0 = inlined_call_operand.hbm [shape: f32[32,128], index: 0, kind: input, shape index: {}]
  %s1 = inlined_call_operand.hbm [shape: f32[128,128], index: 1, kind: input, shape index: {}]
  %s2 = inlined_call_operand.vmem [shape: f32[1,128], index: 2, kind: input, shape index: {}]
  %s3 = inlined_call_operand.hbm [shape: f32[384,128], index: 3, kind: input, shape index: {}]
  %s4 = inlined_call_operand.vmem [shape: f32[1,128], index: 4, kind: input, shape index: {}]
  %s5 = inlined_call_operand.hbm [shape: f32[384,128], index: 5, kind: input, shape index: {}]
  %s6 = inlined_call_operand.vmem [shape: f32[1,128], index: 6, kind: input, shape index: {}]
  %s7 = inlined_call_operand.hbm [shape: f32[32,128], index: 7, kind: output, shape index: {}]
  %s8 = sld [smem:[#allocation0]]
  $region77: #{tpu_custom_call.1} parent=0
    _
  %s10 = ssub.s32 1, %s8
  %s11 = scalar_select 0, %s10, %s8
  $region1: #{tpu_custom_call.1} parent=0
    #allocation2 [shape = 'u8[16384]{0}', space=vmem, size = 0x4000, scoped, tag = 'input window, operand 0']
    #allocation3 [shape = 's32[2]{0}', space=sflag, size = 0x8, scoped, tag = 'scoped memory for tpu_custom_call.1']
    #allocation4 [shape = 's32[2]{0}', space=sflag, size = 0x8, scoped, tag = 'scoped memory for tpu_custom_call.1']
    #allocation5 [shape = 'u8[65536]{0}', space=vmem, size = 0x10000, scoped, tag = 'input window, operand 1, single buffered']
    #allocation6 [shape = 's32[1]{0}', space=sflag, size = 0x4, scoped, tag = 'scoped memory for tpu_custom_call.1']
    #allocation7 [shape = 'u8[196608]{0}', space=vmem, size = 0x30000, scoped, tag = 'input window, operand 3, single buffered']
    #allocation8 [shape = 'u8[196608]{0}', space=vmem, size = 0x30000, scoped, tag = 'input window, operand 5, single buffered']
    #allocation9 [shape = 's32[1]{0}', space=sflag, size = 0x4, scoped, tag = 'scoped memory for tpu_custom_call.1']
    #allocation10 [shape = 'u8[16384]{0}', space=vmem, size = 0x4000, scoped, tag = 'output window, operand 0']
    %12 = vsyncpa [#allocation3], 0
    %s13 = scalar_lea.sflag [#allocation3], 1
    %14 = vsyncpa %s13, 0
    %15 = vsyncpa [#allocation6], 0
    %16 = vsyncpa [#allocation9], 0
    %17 = vsyncpa [#allocation4], 0
    %s18 = scalar_lea.sflag [#allocation4], 1
    %19 = vsyncpa %s18, 0
    loop: start=0, step=1, limit=4
    $region2: #{tpu_custom_call.1} parent=1 // loop_pre_header
      _
    $region3: #{tpu_custom_call.1} parent=1 // loop_header
      %s21 = sphi 0, %s25
      %p22 = scmp.ge.s32.totalorder %s21, 4
      %s31 = sphi 0, %s33
      %s34 = sphi 0, %s31
      %s35 = sphi 0, %s34
      %s51 = sphi 0, %s35
      %s55 = sphi 0, %s55
      %s57 = sphi 0, %s55
      %s58 = sphi 0, %s57
      %s72 = sphi 0, %s58
      %s76 = sphi 0, %s76
      %s78 = sphi 0, %s76
      %s79 = sphi 0, %s78
      %s93 = sphi 0, %s79
      %s97 = sphi 0, %s97
      %s99 = sphi 0, %s97
      %s100 = sphi 0, %s99
      %s114 = sphi 0, %s100
      %s118 = sphi 0, %s118
      %s120 = sphi 0, %s118
      %s121 = sphi 0, %s120
      %s135 = sphi 0, %s121
      %s139 = sphi 0, %s139
      %s141 = sphi 0, %s139
      %s142 = sphi 0, %s141
      %s156 = sphi 0, %s142
      %s160 = sphi 0, %s160
      %s162 = sphi 0, %s160
      %s163 = sphi 0, %s162
      %s177 = sphi 0, %s163
      %s183 = sphi 0, %s185
      %s186 = sphi 0, %s183
      %s187 = sphi 0, %s186
      %s203 = sphi 0, %s187
    $region4: #{tpu_custom_call.1} parent=1 // loop_header_branch
      %24 = sbr.rel (%p22) target = $region8
    $region5: #{tpu_custom_call.1} parent=1 // loop_body
      %s26 = ssub.s32 %s21, 1
      %s27 = ssub.s32 %s21, 2
      %s28 = sadd.s32 %s21, 1
      %s29 = ssub.s32 %s21, %s28
      %p30 = scmp.eq.s32.totalorder %s29, 0
      %s32 = sadd.s32 %s31, 1
      %s33 = scalar_select %p30, %s31, %s32
      %p36 = pneg %p30
      %p37 = scmp.eq.s32.totalorder %s21, 1
      %p38 = por %p36, %p37
      %p39 = scmp.ne.s32.totalorder %s31, %s34
      %p40 = scmp.eq.s32.totalorder %s21, 0
      %p41 = por %p39, %p40
      %p42 = scmp.ne.s32.totalorder %s31, %s34
      %p43 = scmp.eq.s32.totalorder %s26, 1
      %p44 = por %p42, %p43
      %p45 = scmp.ne.s32.totalorder %s34, %s35
      %p46 = scmp.eq.s32.totalorder %s26, 0
      %p47 = por %p45, %p46
      %p48 = scmp.ne.s32.totalorder %s34, %s35
      %p49 = scmp.eq.s32.totalorder %s27, 1
      %p50 = por %p48, %p49
      %p52 = scmp.ne.s32.totalorder %s35, %s51
      %p53 = scmp.eq.s32.totalorder %s27, 0
      %p54 = por %p52, %p53
      %s56 = sadd.s32 %s55, 1
      %p59 = scmp.eq.s32.totalorder %s21, 1
      %p60 = scmp.ne.s32.totalorder %s55, %s57
      %p61 = scmp.eq.s32.totalorder %s21, 0
      %p62 = por %p60, %p61
      %p63 = scmp.ne.s32.totalorder %s55, %s57
      %p64 = scmp.eq.s32.totalorder %s26, 1
      %p65 = por %p63, %p64
      %p66 = scmp.ne.s32.totalorder %s57, %s58
      %p67 = scmp.eq.s32.totalorder %s26, 0
      %p68 = por %p66, %p67
      %p69 = scmp.ne.s32.totalorder %s57, %s58
      %p70 = scmp.eq.s32.totalorder %s27, 1
      %p71 = por %p69, %p70
      %p73 = scmp.ne.s32.totalorder %s58, %s72
      %p74 = scmp.eq.s32.totalorder %s27, 0
      %p75 = por %p73, %p74
      %s77 = sadd.s32 %s76, 1
      %p80 = scmp.eq.s32.totalorder %s21, 1
      %p81 = scmp.ne.s32.totalorder %s76, %s78
      %p82 = scmp.eq.s32.totalorder %s21, 0
      %p83 = por %p81, %p82
      %p84 = scmp.ne.s32.totalorder %s76, %s78
      %p85 = scmp.eq.s32.totalorder %s26, 1
      %p86 = por %p84, %p85
      %p87 = scmp.ne.s32.totalorder %s78, %s79
      %p88 = scmp.eq.s32.totalorder %s26, 0
      %p89 = por %p87, %p88
      %p90 = scmp.ne.s32.totalorder %s78, %s79
      %p91 = scmp.eq.s32.totalorder %s27, 1
      %p92 = por %p90, %p91
      %p94 = scmp.ne.s32.totalorder %s79, %s93
      %p95 = scmp.eq.s32.totalorder %s27, 0
      %p96 = por %p94, %p95
      %s98 = sadd.s32 %s97, 1
      %p101 = scmp.eq.s32.totalorder %s21, 1
      %p102 = scmp.ne.s32.totalorder %s97, %s99
      %p103 = scmp.eq.s32.totalorder %s21, 0
      %p104 = por %p102, %p103
      %p105 = scmp.ne.s32.totalorder %s97, %s99
      %p106 = scmp.eq.s32.totalorder %s26, 1
      %p107 = por %p105, %p106
      %p108 = scmp.ne.s32.totalorder %s99, %s100
      %p109 = scmp.eq.s32.totalorder %s26, 0
      %p110 = por %p108, %p109
      %p111 = scmp.ne.s32.totalorder %s99, %s100
      %p112 = scmp.eq.s32.totalorder %s27, 1
      %p113 = por %p111, %p112
      %p115 = scmp.ne.s32.totalorder %s100, %s114
      %p116 = scmp.eq.s32.totalorder %s27, 0
      %p117 = por %p115, %p116
      %s119 = sadd.s32 %s118, 1
      %p122 = scmp.eq.s32.totalorder %s21, 1
      %p123 = scmp.ne.s32.totalorder %s118, %s120
      %p124 = scmp.eq.s32.totalorder %s21, 0
      %p125 = por %p123, %p124
      %p126 = scmp.ne.s32.totalorder %s118, %s120
      %p127 = scmp.eq.s32.totalorder %s26, 1
      %p128 = por %p126, %p127
      %p129 = scmp.ne.s32.totalorder %s120, %s121
      %p130 = scmp.eq.s32.totalorder %s26, 0
      %p131 = por %p129, %p130
      %p132 = scmp.ne.s32.totalorder %s120, %s121
      %p133 = scmp.eq.s32.totalorder %s27, 1
      %p134 = por %p132, %p133
      %p136 = scmp.ne.s32.totalorder %s121, %s135
      %p137 = scmp.eq.s32.totalorder %s27, 0
      %p138 = por %p136, %p137
      %s140 = sadd.s32 %s139, 1
      %p143 = scmp.eq.s32.totalorder %s21, 1
      %p144 = scmp.ne.s32.totalorder %s139, %s141
      %p145 = scmp.eq.s32.totalorder %s21, 0
      %p146 = por %p144, %p145
      %p147 = scmp.ne.s32.totalorder %s139, %s141
      %p148 = scmp.eq.s32.totalorder %s26, 1
      %p149 = por %p147, %p148
      %p150 = scmp.ne.s32.totalorder %s141, %s142
      %p151 = scmp.eq.s32.totalorder %s26, 0
      %p152 = por %p150, %p151
      %p153 = scmp.ne.s32.totalorder %s141, %s142
      %p154 = scmp.eq.s32.totalorder %s27, 1
      %p155 = por %p153, %p154
      %p157 = scmp.ne.s32.totalorder %s142, %s156
      %p158 = scmp.eq.s32.totalorder %s27, 0
      %p159 = por %p157, %p158
      %s161 = sadd.s32 %s160, 1
      %p164 = scmp.eq.s32.totalorder %s21, 1
      %p165 = scmp.ne.s32.totalorder %s160, %s162
      %p166 = scmp.eq.s32.totalorder %s21, 0
      %p167 = por %p165, %p166
      %p168 = scmp.ne.s32.totalorder %s160, %s162
      %p169 = scmp.eq.s32.totalorder %s26, 1
      %p170 = por %p168, %p169
      %p171 = scmp.ne.s32.totalorder %s162, %s163
      %p172 = scmp.eq.s32.totalorder %s26, 0
      %p173 = por %p171, %p172
      %p174 = scmp.ne.s32.totalorder %s162, %s163
      %p175 = scmp.eq.s32.totalorder %s27, 1
      %p176 = por %p174, %p175
      %p178 = scmp.ne.s32.totalorder %s163, %s177
      %p179 = scmp.eq.s32.totalorder %s27, 0
      %p180 = por %p178, %p179
      %s181 = ssub.s32 %s21, %s28
      %p182 = scmp.eq.s32.totalorder %s181, 0
      %s184 = sadd.s32 %s183, 1
      %s185 = scalar_select %p182, %s183, %s184
      %p188 = pneg %p182
      %p189 = scmp.eq.s32.totalorder %s21, 1
      %p190 = por %p188, %p189
      %p191 = scmp.ne.s32.totalorder %s183, %s186
      %p192 = scmp.eq.s32.totalorder %s21, 0
      %p193 = por %p191, %p192
      %p194 = scmp.ne.s32.totalorder %s183, %s186
      %p195 = scmp.eq.s32.totalorder %s26, 1
      %p196 = por %p194, %p195
      %p197 = scmp.ne.s32.totalorder %s186, %s187
      %p198 = scmp.eq.s32.totalorder %s26, 0
      %p199 = por %p197, %p198
      %p200 = scmp.ne.s32.totalorder %s186, %s187
      %p201 = scmp.eq.s32.totalorder %s27, 1
      %p202 = por %p200, %p201
      %p204 = scmp.ne.s32.totalorder %s187, %s203
      %p205 = scmp.eq.s32.totalorder %s27, 0
      %p206 = por %p204, %p205
      %p207 = scmp.le.s32.totalorder 1, %s21
      %p208 = scmp.lt.s32.totalorder %s21, 3
      %p209 = pnand %p207, %p208
      %p210 = pneg %p209
      // Predicated region
      $region9: #{tpu_custom_call.1} parent=5 // pred_check
        _
      $region10: #{tpu_custom_call.1} parent=5 // pred_check_branch
        %212 = sbr.rel (%p209) target = $region12
      $region11: #{tpu_custom_call.1} parent=5 // pred_region
        %s213 = ssub.s32 %s21, 1
        // Predicated region
        $region13: #{tpu_custom_call.1} parent=11 // pred_check
          %p214 = pneg %p68
        $region14: #{tpu_custom_call.1} parent=11 // pred_check_branch
          %216 = sbr.rel (%p214) target = $region16
        $region15: #{tpu_custom_call.1} parent=11 // pred_region
          %s218 = ssub.s32 2048, 2048
          %219 = vsyncadd [#allocation6], %s218
          %s220 = sshll.u32 [#allocation5], 4
          %s221 = int_to_ptr.vmem [resolvable:$true] %s220
          %226 = dma.hbm_to_vmem [thread:$0]  %s1, 2048, %s221, [#allocation6], 128, 128, 8
        $region16: #{tpu_custom_call.1} parent=11 // pred_fallthru
          _
        // Predicated region
        $region17: #{tpu_custom_call.1} parent=11 // pred_check
          %p227 = pneg %p89
        $region18: #{tpu_custom_call.1} parent=11 // pred_check_branch
          %229 = sbr.rel (%p227) target = $region20
        $region19: #{tpu_custom_call.1} parent=11 // pred_region
          _
        $region20: #{tpu_custom_call.1} parent=11 // pred_fallthru
          _
        // Predicated region
        $region21: #{tpu_custom_call.1} parent=11 // pred_check
          %p230 = pneg %p110
        $region22: #{tpu_custom_call.1} parent=11 // pred_check_branch
          %232 = sbr.rel (%p230) target = $region24
        $region23: #{tpu_custom_call.1} parent=11 // pred_region
          %s234 = ssub.s32 6144, 6144
          %235 = vsyncadd [#allocation6], %s234
          %s236 = sshll.u32 [#allocation7], 4
          %s237 = int_to_ptr.vmem [resolvable:$true] %s236
          %242 = dma.hbm_to_vmem [thread:$0]  %s3, 6144, %s237, [#allocation6], 128, 128, 8
        $region24: #{tpu_custom_call.1} parent=11 // pred_fallthru
          _
        // Predicated region
        $region25: #{tpu_custom_call.1} parent=11 // pred_check
          %p243 = pneg %p131
        $region26: #{tpu_custom_call.1} parent=11 // pred_check_branch
          %245 = sbr.rel (%p243) target = $region28
        $region27: #{tpu_custom_call.1} parent=11 // pred_region
          _
        $region28: #{tpu_custom_call.1} parent=11 // pred_fallthru
          _
        // Predicated region
        $region29: #{tpu_custom_call.1} parent=11 // pred_check
          %p246 = pneg %p152
        $region30: #{tpu_custom_call.1} parent=11 // pred_check_branch
          %248 = sbr.rel (%p246) target = $region32
        $region31: #{tpu_custom_call.1} parent=11 // pred_region
          %s250 = ssub.s32 6144, 6144
          %251 = vsyncadd [#allocation9], %s250
          %s252 = sshll.u32 [#allocation8], 4
          %s253 = int_to_ptr.vmem [resolvable:$true] %s252
          %258 = dma.hbm_to_vmem [thread:$0]  %s5, 6144, %s253, [#allocation9], 128, 128, 8
        $region32: #{tpu_custom_call.1} parent=11 // pred_fallthru
          _
        // Predicated region
        $region33: #{tpu_custom_call.1} parent=11 // pred_check
          %p259 = pneg %p173
        $region34: #{tpu_custom_call.1} parent=11 // pred_check_branch
          %261 = sbr.rel (%p259) target = $region36
        $region35: #{tpu_custom_call.1} parent=11 // pred_region
          _
        $region36: #{tpu_custom_call.1} parent=11 // pred_fallthru
          _
      $region12: #{tpu_custom_call.1} parent=5 // pred_fallthru
        _
      %p262 = scmp.lt.s32.totalorder %s21, 2
      // Predicated region
      $region37: #{tpu_custom_call.1} parent=5 // pred_check
        %p263 = pneg %p262
      $region38: #{tpu_custom_call.1} parent=5 // pred_check_branch
        %265 = sbr.rel (%p263) target = $region40
      $region39: #{tpu_custom_call.1} parent=5 // pred_region
        // Predicated region
        $region41: #{tpu_custom_call.1} parent=39 // pred_check
          %p266 = pneg %p41
        $region42: #{tpu_custom_call.1} parent=39 // pred_check_branch
          %268 = sbr.rel (%p266) target = $region44
        $region43: #{tpu_custom_call.1} parent=39 // pred_region
          %s269 = sand.u32 %s31, 1
          %s270 = scalar_lea.sflag [#allocation3], %s269
          %s271 = sand.u32 %s31, 1
          %s272 = smul.addr %s271, 16
          %s273 = scalar_lea.vmem [#allocation2], %s272
          %s274 = smul.u32 2, %s21
          %s276 = ssub.s32 256, 256
          %277 = vsyncadd %s270, %s276
          %s278 = smul.addr %s274, 128
          %s279 = scalar_lea.hbm %s0, %s278
          %s280 = sshll.u32 %s273, 4
          %s281 = int_to_ptr.vmem [resolvable:$true] %s280
          %286 = dma.hbm_to_vmem [thread:$0]  %s279, 256, %s281, %s270, 128, 128, 8
        $region44: #{tpu_custom_call.1} parent=39 // pred_fallthru
          _
      $region40: #{tpu_custom_call.1} parent=5 // pred_fallthru
        _
      %p287 = scmp.le.s32.totalorder 1, %s21
      %p288 = scmp.lt.s32.totalorder %s21, 3
      %p289 = pnand %p287, %p288
      %p290 = pneg %p289
      // Predicated region
      $region45: #{tpu_custom_call.1} parent=5 // pred_check
        _
      $region46: #{tpu_custom_call.1} parent=5 // pred_check_branch
        %292 = sbr.rel (%p289) target = $region48
      $region47: #{tpu_custom_call.1} parent=5 // pred_region
        %s293 = ssub.s32 %s21, 1
        %s294 = sand.u32 %s34, 1
        %s295 = scalar_lea.sflag [#allocation3], %s294
        %s296 = sand.u32 %s34, 1
        %s297 = smul.addr %s296, 16
        %s298 = scalar_lea.vmem [#allocation2], %s297
        // Predicated region
        $region49: #{tpu_custom_call.1} parent=47 // pred_check
          %p299 = pneg %p47
        $region50: #{tpu_custom_call.1} parent=47 // pred_check_branch
          %301 = sbr.rel (%p299) target = $region52
        $region51: #{tpu_custom_call.1} parent=47 // pred_region
          %302 = dma.done %s295, 256
        $region52: #{tpu_custom_call.1} parent=47 // pred_fallthru
          _
        // Predicated region
        $region53: #{tpu_custom_call.1} parent=47 // pred_check
          %p303 = pneg %p68
        $region54: #{tpu_custom_call.1} parent=47 // pred_check_branch
          %305 = sbr.rel (%p303) target = $region56
        $region55: #{tpu_custom_call.1} parent=47 // pred_region
          %306 = dma.done [#allocation6], 2048
        $region56: #{tpu_custom_call.1} parent=47 // pred_fallthru
          _
        // Predicated region
        $region57: #{tpu_custom_call.1} parent=47 // pred_check
          %p307 = pneg %p110
        $region58: #{tpu_custom_call.1} parent=47 // pred_check_branch
          %309 = sbr.rel (%p307) target = $region60
        $region59: #{tpu_custom_call.1} parent=47 // pred_region
          %310 = dma.done [#allocation6], 6144
        $region60: #{tpu_custom_call.1} parent=47 // pred_fallthru
          _
        // Predicated region
        $region61: #{tpu_custom_call.1} parent=47 // pred_check
          %p311 = pneg %p152
        $region62: #{tpu_custom_call.1} parent=47 // pred_check_branch
          %313 = sbr.rel (%p311) target = $region64
        $region63: #{tpu_custom_call.1} parent=47 // pred_region
          %314 = dma.done [#allocation9], 6144
        $region64: #{tpu_custom_call.1} parent=47 // pred_fallthru
          _
        %s315 = sand.u32 %s34, 1
        %s316 = scalar_lea.sflag [#allocation3], %s315
        %s317 = sand.u32 %s34, 1
        %s318 = smul.addr %s317, 16
        %s319 = scalar_lea.vmem [#allocation2], %s318
        %p320 = pneg %p47
        %p321 = pneg %p44
        %p322 = pneg %p68
        %p323 = pneg %p65
        %p324 = pneg %p89
        %p325 = pneg %p86
        %p326 = pneg %p110
        %p327 = pneg %p107
        %p328 = pneg %p131
        %p329 = pneg %p128
        %p330 = pneg %p152
        %p331 = pneg %p149
        %p332 = pneg %p173
        %p333 = pneg %p170
        %p334 = pneg %p199
        %p335 = pneg %p196
        %s336 = sand.u32 %s186, 1
        %s337 = scalar_lea.sflag [#allocation4], %s336
        %s338 = sand.u32 %s186, 1
        %s339 = smul.addr %s338, 16
        %s340 = scalar_lea.vmem [#allocation10], %s339
        %s341 = smul.u32 2, %s26
        %s342 = smul.u32 2, %s26
        %v343 = vlaneseq
        %v344 = vshrl.u32 %v343, 7
        %v345 = vadd.s32 %v344, 8
        %vm346 = vcmp.lt.s32.totalorder %v344, 0
        %v347 = vsub.s32 0, %v344
        %v348 = vsel %vm346, %v347, %v344
        %v349 = vshrl.u32 %v348, 4
        %v350 = vand.u32 %v348, 15
        %v351 = vsub.s32 0, %v350
        %v352 = vsel %vm346, %v351, %v350
        %vm353 = vcmp.lt.s32.totalorder %v345, 0
        %v354 = vsub.s32 0, %v345
        %v355 = vsel %vm353, %v354, %v345
        %v356 = vshrl.u32 %v355, 4
        %v357 = vand.u32 %v355, 15
        %v358 = vsub.s32 0, %v357
        %v359 = vsel %vm353, %v358, %v357
        %vm360 = vcmp.ne.s32.totalorder %v352, 0
        %vm361 = vcmp.ne.s32.totalorder %v359, 0
        %vm362 = vcmp.lt.s32.totalorder %v352, 0
        %vm363 = vcmp.lt.s32.totalorder %v359, 0
        %vm364 = vmand %vm362, %vm360
        %vm365 = vmand %vm363, %vm361
        %v366 = vadd.s32 %v352, 16
        %v367 = vadd.s32 %v359, 16
        %v368 = vsel %vm364, %v366, %v352
        %v369 = vsel %vm365, %v367, %v359
        %vm370 = vcmp.ne.s32.totalorder %v368, 0
        %vm371 = vcmp.ne.s32.totalorder %v369, 0
        %v372 = vsel %vm370, 1, 0
        %v373 = vsel %vm371, 1, 0
        %vm374 = vcmp.eq.s32.totalorder %v372, 1
        %vm375 = vcmp.eq.s32.totalorder %v373, 1
        %vm376 = vcmp.ne.s32.totalorder %v368, 15
        %vm377 = vcmp.ne.s32.totalorder %v369, 15
        %v378 = vsel %vm376, 1, 0
        %v379 = vsel %vm377, 1, 0
        %vm380 = vcmp.eq.s32.totalorder %v378, 1
        %vm381 = vcmp.eq.s32.totalorder %v379, 1
        %v382 = vld [vmem:[%s298] sm:$0xff]
        %v383 = vld [vmem:[%s298 + $0x8] sm:$0xff]
        %v384 = vld [vmem:[#allocation5] sm:$0xff]
        %v385 = vld [vmem:[#allocation5 + $0x8] sm:$0xff]
        %v386 = vld [vmem:[#allocation5 + $0x10] sm:$0xff]
        %v387 = vld [vmem:[#allocation5 + $0x18] sm:$0xff]
        %v388 = vld [vmem:[#allocation5 + $0x20] sm:$0xff]
        %v389 = vld [vmem:[#allocation5 + $0x28] sm:$0xff]
        %v390 = vld [vmem:[#allocation5 + $0x30] sm:$0xff]
        %v391 = vld [vmem:[#allocation5 + $0x38] sm:$0xff]
        %v392 = vld [vmem:[#allocation5 + $0x40] sm:$0xff]
        %v393 = vld [vmem:[#allocation5 + $0x48] sm:$0xff]
        %v394 = vld [vmem:[#allocation5 + $0x50] sm:$0xff]
        %v395 = vld [vmem:[#allocation5 + $0x58] sm:$0xff]
        %v396 = vld [vmem:[#allocation5 + $0x60] sm:$0xff]
        %v397 = vld [vmem:[#allocation5 + $0x68] sm:$0xff]
        %v398 = vld [vmem:[#allocation5 + $0x70] sm:$0xff]
        %v399 = vld [vmem:[#allocation5 + $0x78] sm:$0xff]
        %v400 = vld [vmem:[%s2] sm:$0x1]
        %v402 = vlaneseq
        %v403 = vshrl.u32 %v402, 7
        %v404 = vsub.s32 0, %v403
        %v405 = vrot.slane %v400, %v404
        %407 = vmatprep.subr.mxu0 0.0
        %408 = vmatpush1.msra.mxu0 %v384
        %409 = vmatprep.subr.mxu0 0.0
        %410 = vmatpush1.msra.mxu0 %v385
        %411 = vmatprep.subr.mxu0 0.0
        %412 = vmatpush1.msra.mxu0 %v386
        %413 = vmatprep.subr.mxu0 0.0
        %414 = vmatpush1.msra.mxu0 %v387
        %415 = vmatprep.subr.mxu0 0.0
        %416 = vmatpush1.msra.mxu0 %v388
        %417 = vmatprep.subr.mxu0 0.0
        %418 = vmatpush1.msra.mxu0 %v389
        %419 = vmatprep.subr.mxu0 0.0
        %420 = vmatpush1.msra.mxu0 %v390
        %421 = vmatprep.subr.mxu0 0.0
        %422 = vmatpush1.msra.mxu0 %v391
        %423 = vmatprep.subr.mxu0 0.0
        %424 = vmatpush1.msra.mxu0 %v392
        %425 = vmatprep.subr.mxu0 0.0
        %426 = vmatpush1.msra.mxu0 %v393
        %427 = vmatprep.subr.mxu0 0.0
        %428 = vmatpush1.msra.mxu0 %v394
        %429 = vmatprep.subr.mxu0 0.0
        %430 = vmatpush1.msra.mxu0 %v395
        %431 = vmatprep.subr.mxu0 0.0
        %432 = vmatpush1.msra.mxu0 %v396
        %433 = vmatprep.subr.mxu0 0.0
        %434 = vmatpush1.msra.mxu0 %v397
        %435 = vmatprep.subr.mxu0 0.0
        %436 = vmatpush1.msra.mxu0 %v398
        %437 = vmatprep.subr.mxu0 0.0
        %438 = vmatpush1.msra.mxu0 %v399
        %439 = vmatprep.subr.mxu0 0.0
        %440 = vmatpush1.msra.mxu0 0.0
        %441 = vmatprep.subr.mxu0 0.0
        %442 = vmatpush1.msra.mxu0 0.0
        %443 = vmatprep.subr.mxu0 0.0
        %444 = vmatpush1.msra.mxu0 0.0
        %445 = vmatprep.subr.mxu0 0.0
        %446 = vmatpush1.msra.mxu0 0.0
        %447 = vmatprep.subr.mxu0 0.0
        %448 = vmatpush1.msra.mxu0 0.0
        %449 = vmatprep.subr.mxu0 0.0
        %450 = vmatpush1.msra.mxu0 0.0
        %451 = vmatprep.subr.mxu0 0.0
        %452 = vmatpush1.msra.mxu0 0.0
        %453 = vmatprep.subr.mxu0 0.0
        %454 = vmatpush1.msra.mxu0 0.0
        %455 = vmatprep.subr.mxu0 0.0
        %456 = vmatpush1.msra.mxu0 0.0
        %457 = vmatprep.subr.mxu0 0.0
        %458 = vmatpush1.msra.mxu0 0.0
        %459 = vmatprep.subr.mxu0 0.0
        %460 = vmatpush1.msra.mxu0 0.0
        %461 = vmatprep.subr.mxu0 0.0
        %462 = vmatpush1.msra.mxu0 0.0
        %463 = vmatprep.subr.mxu0 0.0
        %464 = vmatpush1.msra.mxu0 0.0
        %465 = vmatprep.subr.mxu0 0.0
        %466 = vmatpush1.msra.mxu0 0.0
        %467 = vmatprep.subr.mxu0 0.0
        %468 = vmatpush1.msra.mxu0 0.0
        %469 = vmatprep.subr.mxu0 0.0
        %470 = vmatpush1.msra.mxu0 0.0
        %471 = vmatprep.mubr.f32.mxu0 0.0
        %472 = vmatmul.mubr.f32.gmra.mrb[0].mxu0 %v382
        %v473 = vpop.f32.mrb[0].mxu0
        %v474 = vadd.f32 %v405, %v473
        %v475 = vpop.f32.mrb[0].mxu0
        %476 = vmatprep.mubr.f32.mxu0 0.0
        %477 = vmatmul.mubr.f32.gmra.mrb[0].mxu0 %v383
        %v478 = vpop.f32.mrb[0].mxu0
        %v479 = vadd.f32 %v405, %v478
        %v480 = vpop.f32.mrb[0].mxu0
        %481 = vdwg.mxu0
        %482 = vst [vmem:[%s340] sm:$0xff] %v474
        %483 = vst [vmem:[%s340 + $0x8] sm:$0xff] %v479
        %v484 = vrot.slane %v474, 7
        %v485 = vrot.slane %v479, 7
        %vm486 = vcmp.lt.s32.totalorder %v344, 1
        %v487 = vsel %vm486, %v484, %v485
        %v488 = vsel %vm486, %v485, %v484
        %v489 = vsel %vm374, %v488, 0.0
        %v490 = vsel %vm375, %v487, 0.0
        %v491 = vrot.slane %v474, 1
        %v492 = vrot.slane %v479, 1
        %vm493 = vcmp.lt.s32.totalorder %v344, 7
        %v494 = vsel %vm493, %v491, %v492
        %v495 = vsel %vm493, %v492, %v491
        %v496 = vsel %vm380, %v494, 0.0
        %v497 = vsel %vm381, %v495, 0.0
        %v498 = vld [vmem:[#allocation7] sm:$0xff]
        %v499 = vld [vmem:[#allocation7 + $0x8] sm:$0xff]
        %v500 = vld [vmem:[#allocation7 + $0x10] sm:$0xff]
        %v501 = vld [vmem:[#allocation7 + $0x18] sm:$0xff]
        %v502 = vld [vmem:[#allocation7 + $0x20] sm:$0xff]
        %v503 = vld [vmem:[#allocation7 + $0x28] sm:$0xff]
        %v504 = vld [vmem:[#allocation7 + $0x30] sm:$0xff]
        %v505 = vld [vmem:[#allocation7 + $0x38] sm:$0xff]
        %v506 = vld [vmem:[#allocation7 + $0x40] sm:$0xff]
        %v507 = vld [vmem:[#allocation7 + $0x48] sm:$0xff]
        %v508 = vld [vmem:[#allocation7 + $0x50] sm:$0xff]
        %v509 = vld [vmem:[#allocation7 + $0x58] sm:$0xff]
        %v510 = vld [vmem:[#allocation7 + $0x60] sm:$0xff]
        %v511 = vld [vmem:[#allocation7 + $0x68] sm:$0xff]
        %v512 = vld [vmem:[#allocation7 + $0x70] sm:$0xff]
        %v513 = vld [vmem:[#allocation7 + $0x78] sm:$0xff]
        %v514 = vld [vmem:[#allocation7 + $0x80] sm:$0xff]
        %v515 = vld [vmem:[#allocation7 + $0x88] sm:$0xff]
        %v516 = vld [vmem:[#allocation7 + $0x90] sm:$0xff]
        %v517 = vld [vmem:[#allocation7 + $0x98] sm:$0xff]
        %v518 = vld [vmem:[#allocation7 + $0xa0] sm:$0xff]
        %v519 = vld [vmem:[#allocation7 + $0xa8] sm:$0xff]
        %v520 = vld [vmem:[#allocation7 + $0xb0] sm:$0xff]
        %v521 = vld [vmem:[#allocation7 + $0xb8] sm:$0xff]
        %v522 = vld [vmem:[#allocation7 + $0xc0] sm:$0xff]
        %v523 = vld [vmem:[#allocation7 + $0xc8] sm:$0xff]
        %v524 = vld [vmem:[#allocation7 + $0xd0] sm:$0xff]
        %v525 = vld [vmem:[#allocation7 + $0xd8] sm:$0xff]
        %v526 = vld [vmem:[#allocation7 + $0xe0] sm:$0xff]
        %v527 = vld [vmem:[#allocation7 + $0xe8] sm:$0xff]
        %v528 = vld [vmem:[#allocation7 + $0xf0] sm:$0xff]
        %v529 = vld [vmem:[#allocation7 + $0xf8] sm:$0xff]
        %530 = vmatprep.subr.mxu0 0.0
        %531 = vmatpush1.msra.mxu0 %v514
        %532 = vmatprep.subr.mxu0 0.0
        %533 = vmatpush1.msra.mxu0 %v515
        %534 = vmatprep.subr.mxu0 0.0
        %535 = vmatpush1.msra.mxu0 %v516
        %536 = vmatprep.subr.mxu0 0.0
        %537 = vmatpush1.msra.mxu0 %v517
        %538 = vmatprep.subr.mxu0 0.0
        %539 = vmatpush1.msra.mxu0 %v518
        %540 = vmatprep.subr.mxu0 0.0
        %541 = vmatpush1.msra.mxu0 %v519
        %542 = vmatprep.subr.mxu0 0.0
        %543 = vmatpush1.msra.mxu0 %v520
        %544 = vmatprep.subr.mxu0 0.0
        %545 = vmatpush1.msra.mxu0 %v521
        %546 = vmatprep.subr.mxu0 0.0
        %547 = vmatpush1.msra.mxu0 %v522
        %548 = vmatprep.subr.mxu0 0.0
        %549 = vmatpush1.msra.mxu0 %v523
        %550 = vmatprep.subr.mxu0 0.0
        %551 = vmatpush1.msra.mxu0 %v524
        %552 = vmatprep.subr.mxu0 0.0
        %553 = vmatpush1.msra.mxu0 %v525
        %554 = vmatprep.subr.mxu0 0.0
        %555 = vmatpush1.msra.mxu0 %v526
        %556 = vmatprep.subr.mxu0 0.0
        %557 = vmatpush1.msra.mxu0 %v527
        %558 = vmatprep.subr.mxu0 0.0
        %559 = vmatpush1.msra.mxu0 %v528
        %560 = vmatprep.subr.mxu0 0.0
        %561 = vmatpush1.msra.mxu0 %v529
        %562 = vmatprep.subr.mxu0 0.0
        %563 = vmatpush1.msra.mxu0 0.0
        %564 = vmatprep.subr.mxu0 0.0
        %565 = vmatpush1.msra.mxu0 0.0
        %566 = vmatprep.subr.mxu0 0.0
        %567 = vmatpush1.msra.mxu0 0.0
        %568 = vmatprep.subr.mxu0 0.0
        %569 = vmatpush1.msra.mxu0 0.0
        %570 = vmatprep.subr.mxu0 0.0
        %571 = vmatpush1.msra.mxu0 0.0
        %572 = vmatprep.subr.mxu0 0.0
        %573 = vmatpush1.msra.mxu0 0.0
        %574 = vmatprep.subr.mxu0 0.0
        %575 = vmatpush1.msra.mxu0 0.0
        %576 = vmatprep.subr.mxu0 0.0
        %577 = vmatpush1.msra.mxu0 0.0
        %578 = vmatprep.subr.mxu0 0.0
        %579 = vmatpush1.msra.mxu0 0.0
        %580 = vmatprep.subr.mxu0 0.0
        %581 = vmatpush1.msra.mxu0 0.0
        %582 = vmatprep.subr.mxu0 0.0
        %583 = vmatpush1.msra.mxu0 0.0
        %584 = vmatprep.subr.mxu0 0.0
        %585 = vmatpush1.msra.mxu0 0.0
        %586 = vmatprep.subr.mxu0 0.0
        %587 = vmatpush1.msra.mxu0 0.0
        %588 = vmatprep.subr.mxu0 0.0
        %589 = vmatpush1.msra.mxu0 0.0
        %590 = vmatprep.subr.mxu0 0.0
        %591 = vmatpush1.msra.mxu0 0.0
        %592 = vmatprep.subr.mxu0 0.0
        %593 = vmatpush1.msra.mxu0 0.0
        %594 = vmatprep.mubr.f32.mxu0 0.0
        %595 = vmatmul.mubr.f32.gmra.mrb[0].mxu0 %v474
        %v596 = vpop.f32.mrb[0].mxu0
        %v597 = vadd.f32 0.0, %v596
        %v598 = vpop.f32.mrb[0].mxu0
        %599 = vmatprep.mubr.f32.mxu0 0.0
        %600 = vmatmul.mubr.f32.gmra.mrb[0].mxu0 %v479
        %v601 = vpop.f32.mrb[0].mxu0
        %v602 = vadd.f32 0.0, %v601
        %v603 = vpop.f32.mrb[0].mxu0
        %604 = vdwg.mxu0
        %605 = vmatprep.subr.mxu0 0.0
        %606 = vmatpush1.msra.mxu0 %v498
        %607 = vmatprep.subr.mxu0 0.0
        %608 = vmatpush1.msra.mxu0 %v499
        %609 = vmatprep.subr.mxu0 0.0
        %610 = vmatpush1.msra.mxu0 %v500
        %611 = vmatprep.subr.mxu0 0.0
        %612 = vmatpush1.msra.mxu0 %v501
        %613 = vmatprep.subr.mxu0 0.0
        %614 = vmatpush1.msra.mxu0 %v502
        %615 = vmatprep.subr.mxu0 0.0
        %616 = vmatpush1.msra.mxu0 %v503
        %617 = vmatprep.subr.mxu0 0.0
        %618 = vmatpush1.msra.mxu0 %v504
        %619 = vmatprep.subr.mxu0 0.0
        %620 = vmatpush1.msra.mxu0 %v505
        %621 = vmatprep.subr.mxu0 0.0
        %622 = vmatpush1.msra.mxu0 %v506
        %623 = vmatprep.subr.mxu0 0.0
        %624 = vmatpush1.msra.mxu0 %v507
        %625 = vmatprep.subr.mxu0 0.0
        %626 = vmatpush1.msra.mxu0 %v508
        %627 = vmatprep.subr.mxu0 0.0
        %628 = vmatpush1.msra.mxu0 %v509
        %629 = vmatprep.subr.mxu0 0.0
        %630 = vmatpush1.msra.mxu0 %v510
        %631 = vmatprep.subr.mxu0 0.0
        %632 = vmatpush1.msra.mxu0 %v511
        %633 = vmatprep.subr.mxu0 0.0
        %634 = vmatpush1.msra.mxu0 %v512
        %635 = vmatprep.subr.mxu0 0.0
        %636 = vmatpush1.msra.mxu0 %v513
        %637 = vmatprep.subr.mxu0 0.0
        %638 = vmatpush1.msra.mxu0 0.0
        %639 = vmatprep.subr.mxu0 0.0
        %640 = vmatpush1.msra.mxu0 0.0
        %641 = vmatprep.subr.mxu0 0.0
        %642 = vmatpush1.msra.mxu0 0.0
        %643 = vmatprep.subr.mxu0 0.0
        %644 = vmatpush1.msra.mxu0 0.0
        %645 = vmatprep.subr.mxu0 0.0
        %646 = vmatpush1.msra.mxu0 0.0
        %647 = vmatprep.subr.mxu0 0.0
        %648 = vmatpush1.msra.mxu0 0.0
        %649 = vmatprep.subr.mxu0 0.0
        %650 = vmatpush1.msra.mxu0 0.0
        %651 = vmatprep.subr.mxu0 0.0
        %652 = vmatpush1.msra.mxu0 0.0
        %653 = vmatprep.subr.mxu0 0.0
        %654 = vmatpush1.msra.mxu0 0.0
        %655 = vmatprep.subr.mxu0 0.0
        %656 = vmatpush1.msra.mxu0 0.0
        %657 = vmatprep.subr.mxu0 0.0
        %658 = vmatpush1.msra.mxu0 0.0
        %659 = vmatprep.subr.mxu0 0.0
        %660 = vmatpush1.msra.mxu0 0.0
        %661 = vmatprep.subr.mxu0 0.0
        %662 = vmatpush1.msra.mxu0 0.0
        %663 = vmatprep.subr.mxu0 0.0
        %664 = vmatpush1.msra.mxu0 0.0
        %665 = vmatprep.subr.mxu0 0.0
        %666 = vmatpush1.msra.mxu0 0.0
        %667 = vmatprep.subr.mxu0 0.0
        %668 = vmatpush1.msra.mxu0 0.0
        %669 = vmatprep.mubr.f32.mxu0 0.0
        %670 = vmatmul.mubr.f32.gmra.mrb[0].mxu0 %v489
        %v671 = vpop.f32.mrb[0].mxu0
        %v672 = vadd.f32 %v597, %v671
        %v673 = vpop.f32.mrb[0].mxu0
        %674 = vmatprep.mubr.f32.mxu0 0.0
        %675 = vmatmul.mubr.f32.gmra.mrb[0].mxu0 %v490
        %v676 = vpop.f32.mrb[0].mxu0
        %v677 = vadd.f32 %v602, %v676
        %v678 = vpop.f32.mrb[0].mxu0
        %679 = vdwg.mxu0
        %v680 = vld [vmem:[#allocation7 + $0x100] sm:$0xff]
        %v681 = vld [vmem:[#allocation7 + $0x108] sm:$0xff]
        %v682 = vld [vmem:[#allocation7 + $0x110] sm:$0xff]
        %v683 = vld [vmem:[#allocation7 + $0x118] sm:$0xff]
        %v684 = vld [vmem:[#allocation7 + $0x120] sm:$0xff]
        %v685 = vld [vmem:[#allocation7 + $0x128] sm:$0xff]
        %v686 = vld [vmem:[#allocation7 + $0x130] sm:$0xff]
        %v687 = vld [vmem:[#allocation7 + $0x138] sm:$0xff]
        %v688 = vld [vmem:[#allocation7 + $0x140] sm:$0xff]
        %v689 = vld [vmem:[#allocation7 + $0x148] sm:$0xff]
        %v690 = vld [vmem:[#allocation7 + $0x150] sm:$0xff]
        %v691 = vld [vmem:[#allocation7 + $0x158] sm:$0xff]
        %v692 = vld [vmem:[#allocation7 + $0x160] sm:$0xff]
        %v693 = vld [vmem:[#allocation7 + $0x168] sm:$0xff]
        %v694 = vld [vmem:[#allocation7 + $0x170] sm:$0xff]
        %v695 = vld [vmem:[#allocation7 + $0x178] sm:$0xff]
        %696 = vmatprep.subr.mxu0 0.0
        %697 = vmatpush1.msra.mxu0 %v680
        %698 = vmatprep.subr.mxu0 0.0
        %699 = vmatpush1.msra.mxu0 %v681
        %700 = vmatprep.subr.mxu0 0.0
        %701 = vmatpush1.msra.mxu0 %v682
        %702 = vmatprep.subr.mxu0 0.0
        %703 = vmatpush1.msra.mxu0 %v683
        %704 = vmatprep.subr.mxu0 0.0
        %705 = vmatpush1.msra.mxu0 %v684
        %706 = vmatprep.subr.mxu0 0.0
        %707 = vmatpush1.msra.mxu0 %v685
        %708 = vmatprep.subr.mxu0 0.0
        %709 = vmatpush1.msra.mxu0 %v686
        %710 = vmatprep.subr.mxu0 0.0
        %711 = vmatpush1.msra.mxu0 %v687
        %712 = vmatprep.subr.mxu0 0.0
        %713 = vmatpush1.msra.mxu0 %v688
        %714 = vmatprep.subr.mxu0 0.0
        %715 = vmatpush1.msra.mxu0 %v689
        %716 = vmatprep.subr.mxu0 0.0
        %717 = vmatpush1.msra.mxu0 %v690
        %718 = vmatprep.subr.mxu0 0.0
        %719 = vmatpush1.msra.mxu0 %v691
        %720 = vmatprep.subr.mxu0 0.0
        %721 = vmatpush1.msra.mxu0 %v692
        %722 = vmatprep.subr.mxu0 0.0
        %723 = vmatpush1.msra.mxu0 %v693
        %724 = vmatprep.subr.mxu0 0.0
        %725 = vmatpush1.msra.mxu0 %v694
        %726 = vmatprep.subr.mxu0 0.0
        %727 = vmatpush1.msra.mxu0 %v695
        %728 = vmatprep.subr.mxu0 0.0
        %729 = vmatpush1.msra.mxu0 0.0
        %730 = vmatprep.subr.mxu0 0.0
        %731 = vmatpush1.msra.mxu0 0.0
        %732 = vmatprep.subr.mxu0 0.0
        %733 = vmatpush1.msra.mxu0 0.0
        %734 = vmatprep.subr.mxu0 0.0
        %735 = vmatpush1.msra.mxu0 0.0
        %736 = vmatprep.subr.mxu0 0.0
        %737 = vmatpush1.msra.mxu0 0.0
        %738 = vmatprep.subr.mxu0 0.0
        %739 = vmatpush1.msra.mxu0 0.0
        %740 = vmatprep.subr.mxu0 0.0
        %741 = vmatpush1.msra.mxu0 0.0
        %742 = vmatprep.subr.mxu0 0.0
        %743 = vmatpush1.msra.mxu0 0.0
        %744 = vmatprep.subr.mxu0 0.0
        %745 = vmatpush1.msra.mxu0 0.0
        %746 = vmatprep.subr.mxu0 0.0
        %747 = vmatpush1.msra.mxu0 0.0
        %748 = vmatprep.subr.mxu0 0.0
        %749 = vmatpush1.msra.mxu0 0.0
        %750 = vmatprep.subr.mxu0 0.0
        %751 = vmatpush1.msra.mxu0 0.0
        %752 = vmatprep.subr.mxu0 0.0
        %753 = vmatpush1.msra.mxu0 0.0
        %754 = vmatprep.subr.mxu0 0.0
        %755 = vmatpush1.msra.mxu0 0.0
        %756 = vmatprep.subr.mxu0 0.0
        %757 = vmatpush1.msra.mxu0 0.0
        %758 = vmatprep.subr.mxu0 0.0
        %759 = vmatpush1.msra.mxu0 0.0
        %760 = vmatprep.mubr.f32.mxu0 0.0
        %761 = vmatmul.mubr.f32.gmra.mrb[0].mxu0 %v496
        %v762 = vpop.f32.mrb[0].mxu0
        %v763 = vadd.f32 0.0, %v762
        %v764 = vpop.f32.mrb[0].mxu0
        %765 = vmatprep.mubr.f32.mxu0 0.0
        %766 = vmatmul.mubr.f32.gmra.mrb[0].mxu0 %v497
        %v767 = vpop.f32.mrb[0].mxu0
        %v768 = vadd.f32 0.0, %v767
        %v769 = vpop.f32.mrb[0].mxu0
        %770 = vdwg.mxu0
        %v771 = vadd.f32 %v672, %v763
        %v772 = vadd.f32 %v677, %v768
        %v773 = vld [vmem:[%s4] sm:$0x1]
        %v775 = vlaneseq
        %v776 = vshrl.u32 %v775, 7
        %v777 = vsub.s32 0, %v776
        %v778 = vrot.slane %v773, %v777
        %v780 = vadd.f32 %v771, %v778
        %v781 = vadd.f32 %v772, %v778
        %v782 = vmax.f32 %v780, 0.0
        %v783 = vmax.f32 %v781, 0.0
        %v784 = vrot.slane %v782, 7
        %v785 = vrot.slane %v783, 7
        %v786 = vsel %vm486, %v784, %v785
        %v787 = vsel %vm486, %v785, %v784
        %v788 = vsel %vm374, %v787, 0.0
        %v789 = vsel %vm375, %v786, 0.0
        %v790 = vrot.slane %v782, 1
        %v791 = vrot.slane %v783, 1
        %v792 = vsel %vm493, %v790, %v791
        %v793 = vsel %vm493, %v791, %v790
        %v794 = vsel %vm380, %v792, 0.0
        %v795 = vsel %vm381, %v793, 0.0
        %v796 = vld [vmem:[#allocation8] sm:$0xff]
        %v797 = vld [vmem:[#allocation8 + $0x8] sm:$0xff]
        %v798 = vld [vmem:[#allocation8 + $0x10] sm:$0xff]
        %v799 = vld [vmem:[#allocation8 + $0x18] sm:$0xff]
        %v800 = vld [vmem:[#allocation8 + $0x20] sm:$0xff]
        %v801 = vld [vmem:[#allocation8 + $0x28] sm:$0xff]
        %v802 = vld [vmem:[#allocation8 + $0x30] sm:$0xff]
        %v803 = vld [vmem:[#allocation8 + $0x38] sm:$0xff]
        %v804 = vld [vmem:[#allocation8 + $0x40] sm:$0xff]
        %v805 = vld [vmem:[#allocation8 + $0x48] sm:$0xff]
        %v806 = vld [vmem:[#allocation8 + $0x50] sm:$0xff]
        %v807 = vld [vmem:[#allocation8 + $0x58] sm:$0xff]
        %v808 = vld [vmem:[#allocation8 + $0x60] sm:$0xff]
        %v809 = vld [vmem:[#allocation8 + $0x68] sm:$0xff]
        %v810 = vld [vmem:[#allocation8 + $0x70] sm:$0xff]
        %v811 = vld [vmem:[#allocation8 + $0x78] sm:$0xff]
        %v812 = vld [vmem:[#allocation8 + $0x80] sm:$0xff]
        %v813 = vld [vmem:[#allocation8 + $0x88] sm:$0xff]
        %v814 = vld [vmem:[#allocation8 + $0x90] sm:$0xff]
        %v815 = vld [vmem:[#allocation8 + $0x98] sm:$0xff]
        %v816 = vld [vmem:[#allocation8 + $0xa0] sm:$0xff]
        %v817 = vld [vmem:[#allocation8 + $0xa8] sm:$0xff]
        %v818 = vld [vmem:[#allocation8 + $0xb0] sm:$0xff]
        %v819 = vld [vmem:[#allocation8 + $0xb8] sm:$0xff]
        %v820 = vld [vmem:[#allocation8 + $0xc0] sm:$0xff]
        %v821 = vld [vmem:[#allocation8 + $0xc8] sm:$0xff]
        %v822 = vld [vmem:[#allocation8 + $0xd0] sm:$0xff]
        %v823 = vld [vmem:[#allocation8 + $0xd8] sm:$0xff]
        %v824 = vld [vmem:[#allocation8 + $0xe0] sm:$0xff]
        %v825 = vld [vmem:[#allocation8 + $0xe8] sm:$0xff]
        %v826 = vld [vmem:[#allocation8 + $0xf0] sm:$0xff]
        %v827 = vld [vmem:[#allocation8 + $0xf8] sm:$0xff]
        %828 = vmatprep.subr.mxu0 0.0
        %829 = vmatpush1.msra.mxu0 %v812
        %830 = vmatprep.subr.mxu0 0.0
        %831 = vmatpush1.msra.mxu0 %v813
        %832 = vmatprep.subr.mxu0 0.0
        %833 = vmatpush1.msra.mxu0 %v814
        %834 = vmatprep.subr.mxu0 0.0
        %835 = vmatpush1.msra.mxu0 %v815
        %836 = vmatprep.subr.mxu0 0.0
        %837 = vmatpush1.msra.mxu0 %v816
        %838 = vmatprep.subr.mxu0 0.0
        %839 = vmatpush1.msra.mxu0 %v817
        %840 = vmatprep.subr.mxu0 0.0
        %841 = vmatpush1.msra.mxu0 %v818
        %842 = vmatprep.subr.mxu0 0.0
        %843 = vmatpush1.msra.mxu0 %v819
        %844 = vmatprep.subr.mxu0 0.0
        %845 = vmatpush1.msra.mxu0 %v820
        %846 = vmatprep.subr.mxu0 0.0
        %847 = vmatpush1.msra.mxu0 %v821
        %848 = vmatprep.subr.mxu0 0.0
        %849 = vmatpush1.msra.mxu0 %v822
        %850 = vmatprep.subr.mxu0 0.0
        %851 = vmatpush1.msra.mxu0 %v823
        %852 = vmatprep.subr.mxu0 0.0
        %853 = vmatpush1.msra.mxu0 %v824
        %854 = vmatprep.subr.mxu0 0.0
        %855 = vmatpush1.msra.mxu0 %v825
        %856 = vmatprep.subr.mxu0 0.0
        %857 = vmatpush1.msra.mxu0 %v826
        %858 = vmatprep.subr.mxu0 0.0
        %859 = vmatpush1.msra.mxu0 %v827
        %860 = vmatprep.subr.mxu0 0.0
        %861 = vmatpush1.msra.mxu0 0.0
        %862 = vmatprep.subr.mxu0 0.0
        %863 = vmatpush1.msra.mxu0 0.0
        %864 = vmatprep.subr.mxu0 0.0
        %865 = vmatpush1.msra.mxu0 0.0
        %866 = vmatprep.subr.mxu0 0.0
        %867 = vmatpush1.msra.mxu0 0.0
        %868 = vmatprep.subr.mxu0 0.0
        %869 = vmatpush1.msra.mxu0 0.0
        %870 = vmatprep.subr.mxu0 0.0
        %871 = vmatpush1.msra.mxu0 0.0
        %872 = vmatprep.subr.mxu0 0.0
        %873 = vmatpush1.msra.mxu0 0.0
        %874 = vmatprep.subr.mxu0 0.0
        %875 = vmatpush1.msra.mxu0 0.0
        %876 = vmatprep.subr.mxu0 0.0
        %877 = vmatpush1.msra.mxu0 0.0
        %878 = vmatprep.subr.mxu0 0.0
        %879 = vmatpush1.msra.mxu0 0.0
        %880 = vmatprep.subr.mxu0 0.0
        %881 = vmatpush1.msra.mxu0 0.0
        %882 = vmatprep.subr.mxu0 0.0
        %883 = vmatpush1.msra.mxu0 0.0
        %884 = vmatprep.subr.mxu0 0.0
        %885 = vmatpush1.msra.mxu0 0.0
        %886 = vmatprep.subr.mxu0 0.0
        %887 = vmatpush1.msra.mxu0 0.0
        %888 = vmatprep.subr.mxu0 0.0
        %889 = vmatpush1.msra.mxu0 0.0
        %890 = vmatprep.subr.mxu0 0.0
        %891 = vmatpush1.msra.mxu0 0.0
        %892 = vmatprep.mubr.f32.mxu0 0.0
        %893 = vmatmul.mubr.f32.gmra.mrb[0].mxu0 %v782
        %v894 = vpop.f32.mrb[0].mxu0
        %v895 = vadd.f32 0.0, %v894
        %v896 = vpop.f32.mrb[0].mxu0
        %897 = vmatprep.mubr.f32.mxu0 0.0
        %898 = vmatmul.mubr.f32.gmra.mrb[0].mxu0 %v783
        %v899 = vpop.f32.mrb[0].mxu0
        %v900 = vadd.f32 0.0, %v899
        %v901 = vpop.f32.mrb[0].mxu0
        %902 = vdwg.mxu0
        %903 = vmatprep.subr.mxu0 0.0
        %904 = vmatpush1.msra.mxu0 %v796
        %905 = vmatprep.subr.mxu0 0.0
        %906 = vmatpush1.msra.mxu0 %v797
        %907 = vmatprep.subr.mxu0 0.0
        %908 = vmatpush1.msra.mxu0 %v798
        %909 = vmatprep.subr.mxu0 0.0
        %910 = vmatpush1.msra.mxu0 %v799
        %911 = vmatprep.subr.mxu0 0.0
        %912 = vmatpush1.msra.mxu0 %v800
        %913 = vmatprep.subr.mxu0 0.0
        %914 = vmatpush1.msra.mxu0 %v801
        %915 = vmatprep.subr.mxu0 0.0
        %916 = vmatpush1.msra.mxu0 %v802
        %917 = vmatprep.subr.mxu0 0.0
        %918 = vmatpush1.msra.mxu0 %v803
        %919 = vmatprep.subr.mxu0 0.0
        %920 = vmatpush1.msra.mxu0 %v804
        %921 = vmatprep.subr.mxu0 0.0
        %922 = vmatpush1.msra.mxu0 %v805
        %923 = vmatprep.subr.mxu0 0.0
        %924 = vmatpush1.msra.mxu0 %v806
        %925 = vmatprep.subr.mxu0 0.0
        %926 = vmatpush1.msra.mxu0 %v807
        %927 = vmatprep.subr.mxu0 0.0
        %928 = vmatpush1.msra.mxu0 %v808
        %929 = vmatprep.subr.mxu0 0.0
        %930 = vmatpush1.msra.mxu0 %v809
        %931 = vmatprep.subr.mxu0 0.0
        %932 = vmatpush1.msra.mxu0 %v810
        %933 = vmatprep.subr.mxu0 0.0
        %934 = vmatpush1.msra.mxu0 %v811
        %935 = vmatprep.subr.mxu0 0.0
        %936 = vmatpush1.msra.mxu0 0.0
        %937 = vmatprep.subr.mxu0 0.0
        %938 = vmatpush1.msra.mxu0 0.0
        %939 = vmatprep.subr.mxu0 0.0
        %940 = vmatpush1.msra.mxu0 0.0
        %941 = vmatprep.subr.mxu0 0.0
        %942 = vmatpush1.msra.mxu0 0.0
        %943 = vmatprep.subr.mxu0 0.0
        %944 = vmatpush1.msra.mxu0 0.0
        %945 = vmatprep.subr.mxu0 0.0
        %946 = vmatpush1.msra.mxu0 0.0
        %947 = vmatprep.subr.mxu0 0.0
        %948 = vmatpush1.msra.mxu0 0.0
        %949 = vmatprep.subr.mxu0 0.0
        %950 = vmatpush1.msra.mxu0 0.0
        %951 = vmatprep.subr.mxu0 0.0
        %952 = vmatpush1.msra.mxu0 0.0
        %953 = vmatprep.subr.mxu0 0.0
        %954 = vmatpush1.msra.mxu0 0.0
        %955 = vmatprep.subr.mxu0 0.0
        %956 = vmatpush1.msra.mxu0 0.0
        %957 = vmatprep.subr.mxu0 0.0
        %958 = vmatpush1.msra.mxu0 0.0
        %959 = vmatprep.subr.mxu0 0.0
        %960 = vmatpush1.msra.mxu0 0.0
        %961 = vmatprep.subr.mxu0 0.0
        %962 = vmatpush1.msra.mxu0 0.0
        %963 = vmatprep.subr.mxu0 0.0
        %964 = vmatpush1.msra.mxu0 0.0
        %965 = vmatprep.subr.mxu0 0.0
        %966 = vmatpush1.msra.mxu0 0.0
        %967 = vmatprep.mubr.f32.mxu0 0.0
        %968 = vmatmul.mubr.f32.gmra.mrb[0].mxu0 %v788
        %v969 = vpop.f32.mrb[0].mxu0
        %v970 = vadd.f32 %v895, %v969
        %v971 = vpop.f32.mrb[0].mxu0
        %972 = vmatprep.mubr.f32.mxu0 0.0
        %973 = vmatmul.mubr.f32.gmra.mrb[0].mxu0 %v789
        %v974 = vpop.f32.mrb[0].mxu0
        %v975 = vadd.f32 %v900, %v974
        %v976 = vpop.f32.mrb[0].mxu0
        %977 = vdwg.mxu0
        %v978 = vld [vmem:[#allocation8 + $0x100] sm:$0xff]
        %v979 = vld [vmem:[#allocation8 + $0x108] sm:$0xff]
        %v980 = vld [vmem:[#allocation8 + $0x110] sm:$0xff]
        %v981 = vld [vmem:[#allocation8 + $0x118] sm:$0xff]
        %v982 = vld [vmem:[#allocation8 + $0x120] sm:$0xff]
        %v983 = vld [vmem:[#allocation8 + $0x128] sm:$0xff]
        %v984 = vld [vmem:[#allocation8 + $0x130] sm:$0xff]
        %v985 = vld [vmem:[#allocation8 + $0x138] sm:$0xff]
        %v986 = vld [vmem:[#allocation8 + $0x140] sm:$0xff]
        %v987 = vld [vmem:[#allocation8 + $0x148] sm:$0xff]
        %v988 = vld [vmem:[#allocation8 + $0x150] sm:$0xff]
        %v989 = vld [vmem:[#allocation8 + $0x158] sm:$0xff]
        %v990 = vld [vmem:[#allocation8 + $0x160] sm:$0xff]
        %v991 = vld [vmem:[#allocation8 + $0x168] sm:$0xff]
        %v992 = vld [vmem:[#allocation8 + $0x170] sm:$0xff]
        %v993 = vld [vmem:[#allocation8 + $0x178] sm:$0xff]
        %994 = vmatprep.subr.mxu0 0.0
        %995 = vmatpush1.msra.mxu0 %v978
        %996 = vmatprep.subr.mxu0 0.0
        %997 = vmatpush1.msra.mxu0 %v979
        %998 = vmatprep.subr.mxu0 0.0
        %999 = vmatpush1.msra.mxu0 %v980
        %1000 = vmatprep.subr.mxu0 0.0
        %1001 = vmatpush1.msra.mxu0 %v981
        %1002 = vmatprep.subr.mxu0 0.0
        %1003 = vmatpush1.msra.mxu0 %v982
        %1004 = vmatprep.subr.mxu0 0.0
        %1005 = vmatpush1.msra.mxu0 %v983
        %1006 = vmatprep.subr.mxu0 0.0
        %1007 = vmatpush1.msra.mxu0 %v984
        %1008 = vmatprep.subr.mxu0 0.0
        %1009 = vmatpush1.msra.mxu0 %v985
        %1010 = vmatprep.subr.mxu0 0.0
        %1011 = vmatpush1.msra.mxu0 %v986
        %1012 = vmatprep.subr.mxu0 0.0
        %1013 = vmatpush1.msra.mxu0 %v987
        %1014 = vmatprep.subr.mxu0 0.0
        %1015 = vmatpush1.msra.mxu0 %v988
        %1016 = vmatprep.subr.mxu0 0.0
        %1017 = vmatpush1.msra.mxu0 %v989
        %1018 = vmatprep.subr.mxu0 0.0
        %1019 = vmatpush1.msra.mxu0 %v990
        %1020 = vmatprep.subr.mxu0 0.0
        %1021 = vmatpush1.msra.mxu0 %v991
        %1022 = vmatprep.subr.mxu0 0.0
        %1023 = vmatpush1.msra.mxu0 %v992
        %1024 = vmatprep.subr.mxu0 0.0
        %1025 = vmatpush1.msra.mxu0 %v993
        %1026 = vmatprep.subr.mxu0 0.0
        %1027 = vmatpush1.msra.mxu0 0.0
        %1028 = vmatprep.subr.mxu0 0.0
        %1029 = vmatpush1.msra.mxu0 0.0
        %1030 = vmatprep.subr.mxu0 0.0
        %1031 = vmatpush1.msra.mxu0 0.0
        %1032 = vmatprep.subr.mxu0 0.0
        %1033 = vmatpush1.msra.mxu0 0.0
        %1034 = vmatprep.subr.mxu0 0.0
        %1035 = vmatpush1.msra.mxu0 0.0
        %1036 = vmatprep.subr.mxu0 0.0
        %1037 = vmatpush1.msra.mxu0 0.0
        %1038 = vmatprep.subr.mxu0 0.0
        %1039 = vmatpush1.msra.mxu0 0.0
        %1040 = vmatprep.subr.mxu0 0.0
        %1041 = vmatpush1.msra.mxu0 0.0
        %1042 = vmatprep.subr.mxu0 0.0
        %1043 = vmatpush1.msra.mxu0 0.0
        %1044 = vmatprep.subr.mxu0 0.0
        %1045 = vmatpush1.msra.mxu0 0.0
        %1046 = vmatprep.subr.mxu0 0.0
        %1047 = vmatpush1.msra.mxu0 0.0
        %1048 = vmatprep.subr.mxu0 0.0
        %1049 = vmatpush1.msra.mxu0 0.0
        %1050 = vmatprep.subr.mxu0 0.0
        %1051 = vmatpush1.msra.mxu0 0.0
        %1052 = vmatprep.subr.mxu0 0.0
        %1053 = vmatpush1.msra.mxu0 0.0
        %1054 = vmatprep.subr.mxu0 0.0
        %1055 = vmatpush1.msra.mxu0 0.0
        %1056 = vmatprep.subr.mxu0 0.0
        %1057 = vmatpush1.msra.mxu0 0.0
        %1058 = vmatprep.mubr.f32.mxu0 0.0
        %1059 = vmatmul.mubr.f32.gmra.mrb[0].mxu0 %v794
        %v1060 = vpop.f32.mrb[0].mxu0
        %v1061 = vadd.f32 0.0, %v1060
        %v1062 = vpop.f32.mrb[0].mxu0
        %1063 = vmatprep.mubr.f32.mxu0 0.0
        %1064 = vmatmul.mubr.f32.gmra.mrb[0].mxu0 %v795
        %v1065 = vpop.f32.mrb[0].mxu0
        %v1066 = vadd.f32 0.0, %v1065
        %v1067 = vpop.f32.mrb[0].mxu0
        %1068 = vdwg.mxu0
        %v1069 = vadd.f32 %v970, %v1061
        %v1070 = vadd.f32 %v975, %v1066
        %v1071 = vld [vmem:[%s6] sm:$0x1]
        %v1073 = vlaneseq
        %v1074 = vshrl.u32 %v1073, 7
        %v1075 = vsub.s32 0, %v1074
        %v1076 = vrot.slane %v1071, %v1075
        %v1078 = vadd.f32 %v1069, %v1076
        %v1079 = vadd.f32 %v1070, %v1076
        %v1080 = vmax.f32 %v1078, 0.0
        %v1081 = vmax.f32 %v1079, 0.0
        %v1082 = vld [vmem:[%s340] sm:$0xff]
        %v1083 = vld [vmem:[%s340 + $0x8] sm:$0xff]
        %v1084 = vadd.f32 %v1080, %v1082
        %v1085 = vadd.f32 %v1081, %v1083
        %1086 = vst [vmem:[%s340] sm:$0xff] %v1084
        %1087 = vst [vmem:[%s340 + $0x8] sm:$0xff] %v1085
        %s1088 = sand.u32 %s186, 1
        %s1089 = scalar_lea.sflag [#allocation4], %s1088
        %s1090 = sand.u32 %s186, 1
        %s1091 = smul.addr %s1090, 16
        %s1092 = scalar_lea.vmem [#allocation10], %s1091
        // Predicated region
        $region65: #{tpu_custom_call.1} parent=47 // pred_check
          %p1093 = pneg %p196
        $region66: #{tpu_custom_call.1} parent=47 // pred_check_branch
          %1095 = sbr.rel (%p1093) target = $region68
        $region67: #{tpu_custom_call.1} parent=47 // pred_region
          %s1096 = smul.u32 2, %s26
          %s1098 = ssub.s32 256, 256
          %1099 = vsyncadd %s1089, %s1098
          %s1100 = smul.addr %s1096, 128
          %s1101 = scalar_lea.hbm %s7, %s1100
          %s1102 = sshll.u32 %s1092, 4
          %s1103 = int_to_ptr.vmem [resolvable:$true] %s1102
          %1108 = dma.vmem_to_hbm [thread:$0]  %s1103, 256, %s1101, %s1089, 128, 128, 8
        $region68: #{tpu_custom_call.1} parent=47 // pred_fallthru
          _
      $region48: #{tpu_custom_call.1} parent=5 // pred_fallthru
        _
      %p1109 = scmp.le.s32.totalorder 2, %s21
      // Predicated region
      $region69: #{tpu_custom_call.1} parent=5 // pred_check
        %p1110 = pneg %p1109
      $region70: #{tpu_custom_call.1} parent=5 // pred_check_branch
        %1112 = sbr.rel (%p1110) target = $region72
      $region71: #{tpu_custom_call.1} parent=5 // pred_region
        %s1113 = ssub.s32 %s21, 2
        // Predicated region
        $region73: #{tpu_custom_call.1} parent=71 // pred_check
          %p1114 = pneg %p202
        $region74: #{tpu_custom_call.1} parent=71 // pred_check_branch
          %1116 = sbr.rel (%p1114) target = $region76
        $region75: #{tpu_custom_call.1} parent=71 // pred_region
          %s1117 = sand.u32 %s187, 1
          %s1118 = scalar_lea.sflag [#allocation4], %s1117
          %s1119 = sand.u32 %s187, 1
          %s1120 = smul.addr %s1119, 16
          %s1121 = scalar_lea.vmem [#allocation10], %s1120
          %1122 = dma.done %s1118, 256
        $region76: #{tpu_custom_call.1} parent=71 // pred_fallthru
          _
      $region72: #{tpu_custom_call.1} parent=5 // pred_fallthru
        _
    $region6: #{tpu_custom_call.1} parent=1 // loop_footer
      %s25 = sadd.s32 1, %s21
    $region7: #{tpu_custom_call.1} parent=1 // loop_footer_branch
      %20 = sbr.rel target = $region3
    $region8: #{tpu_custom_call.1} parent=1 // loop_exit
      _
    %1123 = vsyncpa [#allocation3], 1
    %s1124 = scalar_lea.sflag [#allocation3], 1
    %1125 = vsyncpa %s1124, 1
    %1126 = vsyncpa [#allocation6], 1
    %1127 = vsyncpa [#allocation9], 1
    %1128 = vsyncpa [#allocation4], 1
    %s1129 = scalar_lea.sflag [#allocation4], 1
    %1130 = vsyncpa %s1129, 1

</llo_original>
